<compile_context>
chip_gen: v7x
topology: tpu7x:2x2x1
jax: 0.10.0
libtpu: 0.0.40
codegen_flags: <defaults>
</compile_context>

<pallas_src>
import jax
import jax.numpy as jnp
from jax import lax
from jax.experimental import pallas as pl
from jax.experimental.pallas import tpu as pltpu


def _weight_norm(v, g):
    """Effective conv weight of torch weight_norm (dim=0): g * v / ||v|| per out-channel."""
    norm = jnp.sqrt(jnp.sum(v * v, axis=(1, 2), keepdims=True) + 1e-12)
    return g.reshape(-1, 1, 1) * v / norm


def _make_temporal_block_kernel(k, d, P, PA, TL, c_in, c_out, has_downsample,
                                compute_dtype):
    """Build the kernel with all conv geometry static (k taps fully unrolled)."""

    def kernel(*refs):
        if has_downsample:
            (x_ref, w1_ref, b1_ref, w2_ref, b2_ref, wd_ref, bd_ref,
             out_ref, xext_ref, hext_ref) = refs
        else:
            (x_ref, w1_ref, b1_ref, w2_ref, b2_ref,
             out_ref, xext_ref, hext_ref) = refs
            wd_ref = bd_ref = None

        t = pl.program_id(1)

        # First time tile of each sequence: zero the causal left halo.  The
        # scratch persists across grid steps, so this runs once per sequence.
        if P > 0:
            @pl.when(t == 0)
            def _():
                xext_ref[:, pl.ds(PA - P, P)] = jnp.zeros((c_in, P), compute_dtype)
                hext_ref[:, pl.ds(PA - P, P)] = jnp.zeros((c_out, P), compute_dtype)

        # Stage the current (C_in, TL) tile right of the halo slot.  PA is the
        # pad rounded up to a lane tile, so this (large) store is 128-aligned.
        x_blk = x_ref[...]                                       # (c_in, TL) f32
        xext_ref[:, pl.ds(PA, TL)] = x_blk.astype(compute_dtype)

        # ---- conv1 (causal dilated): k lane-shifted (C_out,C_in)@(C_in,TL)
        # matmuls, f32 accumulation initialized from tap 0.  Chomp is implicit
        # (pure left-pad).
        acc = jnp.dot(w1_ref[0], xext_ref[:, pl.ds(PA - P, TL)],
                      preferred_element_type=jnp.float32)
        for j in range(1, k):
            acc = acc + jnp.dot(w1_ref[j], xext_ref[:, pl.ds(PA - P + j * d, TL)],
                                preferred_element_type=jnp.float32)
        h = jnp.maximum(acc + b1_ref[...], 0.0)                  # relu1
        # TODO(synk): dropout1 (p=0.2) is an eval-mode no-op; omitted.

        # ---- conv2 (causal dilated) over the hidden activations, same scheme.
        hext_ref[:, pl.ds(PA, TL)] = h.astype(compute_dtype)
        acc2 = jnp.dot(w2_ref[0], hext_ref[:, pl.ds(PA - P, TL)],
                       preferred_element_type=jnp.float32)
        for j in range(1, k):
            acc2 = acc2 + jnp.dot(w2_ref[j], hext_ref[:, pl.ds(PA - P + j * d, TL)],
                                  preferred_element_type=jnp.float32)
        out = jnp.maximum(acc2 + b2_ref[...], 0.0)               # chomp2 + relu2
        # TODO(synk): dropout2 (p=0.2) is an eval-mode no-op; omitted.

        # ---- residual (1x1 downsample conv if C_in != C_out) + final relu,
        # stored as one lane-dense (C_out, TL) block.
        if has_downsample:
            res = jnp.dot(wd_ref[...], x_blk.astype(compute_dtype),
                          preferred_element_type=jnp.float32) + bd_ref[...]
        else:
            res = x_blk
        out_ref[...] = jnp.maximum(out + res, 0.0).astype(out_ref.dtype)

        # Carry the last P columns of this tile as the next tile's causal halo.
        if P > 0:
            xext_ref[:, pl.ds(PA - P, P)] = xext_ref[:, pl.ds(PA + TL - P, P)]
            hext_ref[:, pl.ds(PA - P, P)] = hext_ref[:, pl.ds(PA + TL - P, P)]

    return kernel


def _auto_time_tile(length):
    """Largest lane-dense (multiple-of-128) tile dividing L, else the whole L."""
    if length % 128 != 0:
        return length
    for tl in (512, 384, 256, 128):
        if length % tl == 0:
            return tl
    return 128


def temporal_block_forward(x, params, *, kernel_size, stride, dilation, padding,
                           time_tile=None, compute_dtype=jnp.bfloat16):
    """x: (B, C_in, L) float32 -> (B, C_out, L) float32 (eval-mode TemporalBlock)."""
    assert stride == 1, "TCN TemporalBlock is only meaningful with stride=1"
    assert padding == (kernel_size - 1) * dilation, (
        "kernel assumes pure causal padding: padding == (kernel_size-1)*dilation")
    B, C_in, L = x.shape
    k, d, P = kernel_size, dilation, padding

    TL = _auto_time_tile(L) if time_tile is None else time_tile
    assert L % TL == 0, "time_tile must divide L"
    assert TL == L or TL % 128 == 0, "time_tile must be a multiple of 128 (or == L)"
    num_t = L // TL
    PA = 0 if P == 0 else ((P + 127) // 128) * 128   # halo slot, lane-tile aligned

    # Fold weight_norm into effective weights; per-tap layout (k, out, in) so
    # each tap is a plain (C_out, C_in) @ (C_in, TL) matmul.  Matmul operands
    # go to bf16 (f32 accumulation in-kernel); biases stay f32.
    w1 = _weight_norm(params["v1"], params["g1"])                # (C_out, C_in, k)
    w2 = _weight_norm(params["v2"], params["g2"])                # (C_out, C_out, k)
    C_out = w1.shape[0]
    w1_k = jnp.transpose(w1, (2, 0, 1)).astype(compute_dtype)    # (k, C_out, C_in)
    w2_k = jnp.transpose(w2, (2, 0, 1)).astype(compute_dtype)    # (k, C_out, C_out)
    b1 = params["b1"].reshape(C_out, 1).astype(jnp.float32)
    b2 = params["b2"].reshape(C_out, 1).astype(jnp.float32)
    has_downsample = "wd" in params

    in_specs = [
        pl.BlockSpec((None, C_in, TL), lambda b, t: (b, 0, t)),   # x time tile (native layout)
        pl.BlockSpec((k, C_out, C_in), lambda b, t: (0, 0, 0)),   # conv1 weights
        pl.BlockSpec((C_out, 1), lambda b, t: (0, 0)),            # bias1
        pl.BlockSpec((k, C_out, C_out), lambda b, t: (0, 0, 0)),  # conv2 weights
        pl.BlockSpec((C_out, 1), lambda b, t: (0, 0)),            # bias2
    ]
    args = [x, w1_k, b1, w2_k, b2]
    if has_downsample:
        wd = params["wd"][:, :, 0].astype(compute_dtype)          # (C_out, C_in)
        bd = params["bd"].reshape(C_out, 1).astype(jnp.float32)
        in_specs += [pl.BlockSpec((C_out, C_in), lambda b, t: (0, 0)),
                     pl.BlockSpec((C_out, 1), lambda b, t: (0, 0))]
        args += [wd, bd]

    kernel = _make_temporal_block_kernel(k, d, P, PA, TL, C_in, C_out,
                                         has_downsample, compute_dtype)

    # Per-step working set is tiny thanks to time tiling; set an explicit,
    # generously padded VMEM limit that is valid on v7x (64 MiB) as well.
    itemsize = jnp.dtype(compute_dtype).itemsize
    est = (2 * C_in * TL * 4 + 2 * C_out * TL * 4
           + 2 * k * C_out * (C_in + C_out) * itemsize
           + (C_in + C_out) * (PA + TL) * itemsize
           + 8 * C_out * 4)
    vmem_limit = int(min(32 * 1024 * 1024, max(8 * 1024 * 1024, 4 * est)))

    return pl.pallas_call(
        kernel,
        out_shape=jax.ShapeDtypeStruct((B, C_out, L), jnp.float32),
        grid=(B, num_t),
        in_specs=in_specs,
        out_specs=pl.BlockSpec((None, C_out, TL), lambda b, t: (b, 0, t)),
        scratch_shapes=[pltpu.VMEM((C_in, PA + TL), compute_dtype),   # x halo+tile
                        pltpu.VMEM((C_out, PA + TL), compute_dtype)], # h halo+tile
        compiler_params=pltpu.CompilerParams(
            # batch is embarrassingly parallel (megacore on v7x); the time axis
            # carries the causal halo in scratch so it must stay sequential.
            dimension_semantics=("parallel", "arbitrary"),
            vmem_limit_bytes=vmem_limit),
    )(*args)


def init_params(key, n_inputs, n_outputs, kernel_size):
    """Deterministic params mirroring TemporalBlock: weight_norm(v, g) convs + biases;
    downsample 1x1 conv only when n_inputs != n_outputs."""
    ks = jax.random.split(key, 8)
    v1 = 0.01 * jax.random.normal(ks[0], (n_outputs, n_inputs, kernel_size), jnp.float32)
    g1 = jax.random.uniform(ks[1], (n_outputs,), jnp.float32, 0.5, 1.5)
    b1 = 0.1 * jax.random.normal(ks[2], (n_outputs,), jnp.float32)
    v2 = 0.01 * jax.random.normal(ks[3], (n_outputs, n_outputs, kernel_size), jnp.float32)
    g2 = jax.random.uniform(ks[4], (n_outputs,), jnp.float32, 0.5, 1.5)
    b2 = 0.1 * jax.random.normal(ks[5], (n_outputs,), jnp.float32)
    params = {"v1": v1, "g1": g1, "b1": b1, "v2": v2, "g2": g2, "b2": b2}
    if n_inputs != n_outputs:
        params["wd"] = 0.01 * jax.random.normal(ks[6], (n_outputs, n_inputs, 1), jnp.float32)
        params["bd"] = 0.1 * jax.random.normal(ks[7], (n_outputs,), jnp.float32)
    return params


def reference_forward(x, params, *, kernel_size, stride, dilation, padding):
    """Pure-JAX reference of the PyTorch forward (eval mode): conv -> chomp -> relu (x2),
    residual (optional 1x1 conv), final relu."""
    def conv1d(inp, w, b, pad, dil):
        y = lax.conv_general_dilated(
            inp, w, window_strides=(stride,), padding=[(pad, pad)],
            rhs_dilation=(dil,), dimension_numbers=("NCH", "OIH", "NCH"))
        return y + b.reshape(1, -1, 1)

    P = padding
    w1 = _weight_norm(params["v1"], params["g1"])
    w2 = _weight_norm(params["v2"], params["g2"])
    out = conv1d(x, w1, params["b1"], P, dilation)
    out = jnp.maximum(out[:, :, :out.shape[2] - P], 0.0)   # chomp1 + relu1
    out = conv1d(out, w2, params["b2"], P, dilation)
    out = jnp.maximum(out[:, :, :out.shape[2] - P], 0.0)   # chomp2 + relu2
    if "wd" in params:
        res = conv1d(x, params["wd"], params["bd"], 0, 1)
    else:
        res = x
    return jnp.maximum(out + res, 0.0)


if __name__ == "__main__":
    key = jax.random.PRNGKey(0)
    k_param, k_x = jax.random.split(key)

    B = 2
    n_inputs, n_outputs = 4, 8
    kernel_size, stride, dilation = 3, 1, 2
    padding = (kernel_size - 1) * dilation      # standard TCN causal padding
    L = 512                                     # lane-dense; TL=128 -> 4 time tiles/batch

    params = init_params(k_param, n_inputs, n_outputs, kernel_size)
    x = jax.random.normal(k_x, (B, n_inputs, L), jnp.float32)

    ref = jax.block_until_ready(reference_forward(
        x, params, kernel_size=kernel_size, stride=stride,
        dilation=dilation, padding=padding))

    # f32 compute path: tight check of conv / halo-carry / residual plumbing.
    out_f32 = jax.block_until_ready(temporal_block_forward(
        x, params, kernel_size=kernel_size, stride=stride,
        dilation=dilation, padding=padding,
        time_tile=128, compute_dtype=jnp.float32))
    assert out_f32.shape == (B, n_outputs, L), out_f32.shape
    err_f32 = float(jnp.abs(out_f32 - ref).max())
    assert jnp.allclose(out_f32, ref, atol=1e-4, rtol=1e-4), err_f32

    # bf16-operand compute path (production config, f32 accumulation):
    # expect typical bf16-matmul error, check relative L2 deviation.
    out_bf16 = jax.block_until_ready(temporal_block_forward(
        x, params, kernel_size=kernel_size, stride=stride,
        dilation=dilation, padding=padding,
        time_tile=128, compute_dtype=jnp.bfloat16))
    rel_l2 = float(jnp.linalg.norm(out_bf16 - ref) / (jnp.linalg.norm(ref) + 1e-12))
    assert rel_l2 < 2e-2, rel_l2

    print("KERNEL_OK")
</pallas_src>

<mosaic_0001>
module attributes {stable_mosaic.version = 11 : i64} {
  func.func @kernel(%arg0: i32, %arg1: i32, %arg2: memref<1x4x128xf32, #tpu.memory_space<vmem>>, %arg3: memref<3x8x4xf32, #tpu.memory_space<vmem>>, %arg4: memref<8x1xf32, #tpu.memory_space<vmem>>, %arg5: memref<3x8x8xf32, #tpu.memory_space<vmem>>, %arg6: memref<8x1xf32, #tpu.memory_space<vmem>>, %arg7: memref<8x4xf32, #tpu.memory_space<vmem>>, %arg8: memref<8x1xf32, #tpu.memory_space<vmem>>, %arg9: memref<1x8x128xf32, #tpu.memory_space<vmem>>, %arg10: memref<4x256xf32, #tpu.memory_space<vmem>>, %arg11: memref<8x256xf32, #tpu.memory_space<vmem>>) attributes {dimension_semantics = [#tpu.dimension_semantics<parallel>, #tpu.dimension_semantics<arbitrary>], iteration_bounds = array<i64: 2, 4>, scalar_prefetch = 0 : i64, scratch_operands = 2 : i64, tpu.core_type = #tpu.core_type<tc>, window_params = [{transform_indices = @transform_0, window_bounds = array<i64: 1, 4, 128>}, {pipeline_mode = #tpu.pipeline_mode<synchronous>, transform_indices = @transform_1, window_bounds = array<i64: 3, 8, 4>}, {pipeline_mode = #tpu.pipeline_mode<synchronous>, transform_indices = @transform_2, window_bounds = array<i64: 8, 1>}, {pipeline_mode = #tpu.pipeline_mode<synchronous>, transform_indices = @transform_3, window_bounds = array<i64: 3, 8, 8>}, {pipeline_mode = #tpu.pipeline_mode<synchronous>, transform_indices = @transform_4, window_bounds = array<i64: 8, 1>}, {pipeline_mode = #tpu.pipeline_mode<synchronous>, transform_indices = @transform_5, window_bounds = array<i64: 8, 4>}, {pipeline_mode = #tpu.pipeline_mode<synchronous>, transform_indices = @transform_6, window_bounds = array<i64: 8, 1>}, {transform_indices = @transform_7, window_bounds = array<i64: 1, 8, 128>}]} {
    %c0_i32 = arith.constant 0 : i32
    %0 = arith.cmpi eq, %arg1, %c0_i32 : i32
    %1 = arith.extui %0 : i1 to i32
    %c0_i32_0 = arith.constant 0 : i32
    %2 = arith.cmpi ne, %1, %c0_i32_0 : i32
    scf.if %2 {
      %cst_59 = arith.constant 0.000000e+00 : f32
      %60 = vector.broadcast %cst_59 : f32 to vector<4x4xf32>
      %c0_60 = arith.constant 0 : index
      %c124_61 = arith.constant 124 : index
      %61 = vector.load %arg10[%c0_60, %c124_61] : memref<4x256xf32, #tpu.memory_space<vmem>>, vector<4x4xf32>
      tpu.vector_store %arg10[%c0_60, %c124_61], %60 {strides = array<i32>} : memref<4x256xf32, #tpu.memory_space<vmem>>, vector<4x4xf32>,
      %cst_62 = arith.constant 0.000000e+00 : f32
      %62 = vector.broadcast %cst_62 : f32 to vector<8x4xf32>
      %c0_63 = arith.constant 0 : index
      %c124_64 = arith.constant 124 : index
      %63 = vector.load %arg11[%c0_63, %c124_64] : memref<8x256xf32, #tpu.memory_space<vmem>>, vector<8x4xf32>
      tpu.vector_store %arg11[%c0_63, %c124_64], %62 {strides = array<i32>} : memref<8x256xf32, #tpu.memory_space<vmem>>, vector<8x4xf32>,
    } else {
    }
    %c0 = arith.constant 0 : index
    %c0_1 = arith.constant 0 : index
    %c0_2 = arith.constant 0 : index
    %3 = vector.load %arg2[%c0, %c0_1, %c0_2] : memref<1x4x128xf32, #tpu.memory_space<vmem>>, vector<1x4x128xf32>
    %4 = vector.shape_cast %3 : vector<1x4x128xf32> to vector<4x128xf32>
    %c0_3 = arith.constant 0 : index
    %c128 = arith.constant 128 : index
    %5 = vector.load %arg10[%c0_3, %c128] : memref<4x256xf32, #tpu.memory_space<vmem>>, vector<4x128xf32>
    tpu.vector_store %arg10[%c0_3, %c128], %4 {strides = array<i32>} : memref<4x256xf32, #tpu.memory_space<vmem>>, vector<4x128xf32>,
    %c0_4 = arith.constant 0 : index
    %c0_5 = arith.constant 0 : index
    %c0_6 = arith.constant 0 : index
    %6 = vector.load %arg3[%c0_4, %c0_5, %c0_6] : memref<3x8x4xf32, #tpu.memory_space<vmem>>, vector<1x8x4xf32>
    %7 = vector.shape_cast %6 : vector<1x8x4xf32> to vector<8x4xf32>
    %c0_7 = arith.constant 0 : index
    %c124 = arith.constant 124 : index
    %8 = vector.load %arg10[%c0_7, %c124] : memref<4x256xf32, #tpu.memory_space<vmem>>, vector<4x128xf32>
    %cst = arith.constant dense<0.000000e+00> : vector<8x128xf32>
    %9 = tpu.matmul %7, %8, %cst {dimension_numbers = #tpu.dot_dimension_numbers<[1], [0], [0], [1], [0, 0, 1, 1], [], []>} : vector<8x4xf32>, vector<4x128xf32>, vector<8x128xf32> -> vector<8x128xf32>
    %c1 = arith.constant 1 : index
    %c0_8 = arith.constant 0 : index
    %c0_9 = arith.constant 0 : index
    %10 = vector.load %arg3[%c1, %c0_8, %c0_9] : memref<3x8x4xf32, #tpu.memory_space<vmem>>, vector<1x8x4xf32>
    %11 = vector.shape_cast %10 : vector<1x8x4xf32> to vector<8x4xf32>
    %c0_10 = arith.constant 0 : index
    %c126 = arith.constant 126 : index
    %12 = vector.load %arg10[%c0_10, %c126] : memref<4x256xf32, #tpu.memory_space<vmem>>, vector<4x128xf32>
    %cst_11 = arith.constant dense<0.000000e+00> : vector<8x128xf32>
    %13 = tpu.matmul %11, %12, %cst_11 {dimension_numbers = #tpu.dot_dimension_numbers<[1], [0], [0], [1], [0, 0, 1, 1], [], []>} : vector<8x4xf32>, vector<4x128xf32>, vector<8x128xf32> -> vector<8x128xf32>
    %14 = arith.addf %9, %13 : vector<8x128xf32>
    %c2 = arith.constant 2 : index
    %c0_12 = arith.constant 0 : index
    %c0_13 = arith.constant 0 : index
    %15 = vector.load %arg3[%c2, %c0_12, %c0_13] : memref<3x8x4xf32, #tpu.memory_space<vmem>>, vector<1x8x4xf32>
    %16 = vector.shape_cast %15 : vector<1x8x4xf32> to vector<8x4xf32>
    %c0_14 = arith.constant 0 : index
    %c128_15 = arith.constant 128 : index
    %17 = vector.load %arg10[%c0_14, %c128_15] : memref<4x256xf32, #tpu.memory_space<vmem>>, vector<4x128xf32>
    %cst_16 = arith.constant dense<0.000000e+00> : vector<8x128xf32>
    %18 = tpu.matmul %16, %17, %cst_16 {dimension_numbers = #tpu.dot_dimension_numbers<[1], [0], [0], [1], [0, 0, 1, 1], [], []>} : vector<8x4xf32>, vector<4x128xf32>, vector<8x128xf32> -> vector<8x128xf32>
    %19 = arith.addf %14, %18 : vector<8x128xf32>
    %c0_17 = arith.constant 0 : index
    %c0_18 = arith.constant 0 : index
    %20 = vector.load %arg4[%c0_17, %c0_18] : memref<8x1xf32, #tpu.memory_space<vmem>>, vector<8x1xf32>
    %21 = vector.broadcast %20 : vector<8x1xf32> to vector<8x128xf32>
    %22 = arith.addf %19, %21 : vector<8x128xf32>
    %cst_19 = arith.constant 0.000000e+00 : f32
    %23 = vector.broadcast %cst_19 : f32 to vector<8x128xf32>
    %24 = arith.maximumf %22, %23 : vector<8x128xf32>
    %c0_20 = arith.constant 0 : index
    %c128_21 = arith.constant 128 : index
    %25 = vector.load %arg11[%c0_20, %c128_21] : memref<8x256xf32, #tpu.memory_space<vmem>>, vector<8x128xf32>
    tpu.vector_store %arg11[%c0_20, %c128_21], %24 {strides = array<i32>} : memref<8x256xf32, #tpu.memory_space<vmem>>, vector<8x128xf32>,
    %c0_22 = arith.constant 0 : index
    %c0_23 = arith.constant 0 : index
    %c0_24 = arith.constant 0 : index
    %26 = vector.load %arg5[%c0_22, %c0_23, %c0_24] : memref<3x8x8xf32, #tpu.memory_space<vmem>>, vector<1x8x8xf32>
    %27 = vector.shape_cast %26 : vector<1x8x8xf32> to vector<8x8xf32>
    %c0_25 = arith.constant 0 : index
    %c124_26 = arith.constant 124 : index
    %28 = vector.load %arg11[%c0_25, %c124_26] : memref<8x256xf32, #tpu.memory_space<vmem>>, vector<8x128xf32>
    %cst_27 = arith.constant dense<0.000000e+00> : vector<8x128xf32>
    %29 = tpu.matmul %27, %28, %cst_27 {dimension_numbers = #tpu.dot_dimension_numbers<[1], [0], [0], [1], [0, 0, 1, 1], [], []>} : vector<8x8xf32>, vector<8x128xf32>, vector<8x128xf32> -> vector<8x128xf32>
    %c1_28 = arith.constant 1 : index
    %c0_29 = arith.constant 0 : index
    %c0_30 = arith.constant 0 : index
    %30 = vector.load %arg5[%c1_28, %c0_29, %c0_30] : memref<3x8x8xf32, #tpu.memory_space<vmem>>, vector<1x8x8xf32>
    %31 = vector.shape_cast %30 : vector<1x8x8xf32> to vector<8x8xf32>
    %c0_31 = arith.constant 0 : index
    %c126_32 = arith.constant 126 : index
    %32 = vector.load %arg11[%c0_31, %c126_32] : memref<8x256xf32, #tpu.memory_space<vmem>>, vector<8x128xf32>
    %cst_33 = arith.constant dense<0.000000e+00> : vector<8x128xf32>
    %33 = tpu.matmul %31, %32, %cst_33 {dimension_numbers = #tpu.dot_dimension_numbers<[1], [0], [0], [1], [0, 0, 1, 1], [], []>} : vector<8x8xf32>, vector<8x128xf32>, vector<8x128xf32> -> vector<8x128xf32>
    %34 = arith.addf %29, %33 : vector<8x128xf32>
    %c2_34 = arith.constant 2 : index
    %c0_35 = arith.constant 0 : index
    %c0_36 = arith.constant 0 : index
    %35 = vector.load %arg5[%c2_34, %c0_35, %c0_36] : memref<3x8x8xf32, #tpu.memory_space<vmem>>, vector<1x8x8xf32>
    %36 = vector.shape_cast %35 : vector<1x8x8xf32> to vector<8x8xf32>
    %c0_37 = arith.constant 0 : index
    %c128_38 = arith.constant 128 : index
    %37 = vector.load %arg11[%c0_37, %c128_38] : memref<8x256xf32, #tpu.memory_space<vmem>>, vector<8x128xf32>
    %cst_39 = arith.constant dense<0.000000e+00> : vector<8x128xf32>
    %38 = tpu.matmul %36, %37, %cst_39 {dimension_numbers = #tpu.dot_dimension_numbers<[1], [0], [0], [1], [0, 0, 1, 1], [], []>} : vector<8x8xf32>, vector<8x128xf32>, vector<8x128xf32> -> vector<8x128xf32>
    %39 = arith.addf %34, %38 : vector<8x128xf32>
    %c0_40 = arith.constant 0 : index
    %c0_41 = arith.constant 0 : index
    %40 = vector.load %arg6[%c0_40, %c0_41] : memref<8x1xf32, #tpu.memory_space<vmem>>, vector<8x1xf32>
    %41 = vector.broadcast %40 : vector<8x1xf32> to vector<8x128xf32>
    %42 = arith.addf %39, %41 : vector<8x128xf32>
    %cst_42 = arith.constant 0.000000e+00 : f32
    %43 = vector.broadcast %cst_42 : f32 to vector<8x128xf32>
    %44 = arith.maximumf %42, %43 : vector<8x128xf32>
    %c0_43 = arith.constant 0 : index
    %c0_44 = arith.constant 0 : index
    %45 = vector.load %arg7[%c0_43, %c0_44] : memref<8x4xf32, #tpu.memory_space<vmem>>, vector<8x4xf32>
    %cst_45 = arith.constant dense<0.000000e+00> : vector<8x128xf32>
    %46 = tpu.matmul %45, %4, %cst_45 {dimension_numbers = #tpu.dot_dimension_numbers<[1], [0], [0], [1], [0, 0, 1, 1], [], []>} : vector<8x4xf32>, vector<4x128xf32>, vector<8x128xf32> -> vector<8x128xf32>
    %c0_46 = arith.constant 0 : index
    %c0_47 = arith.constant 0 : index
    %47 = vector.load %arg8[%c0_46, %c0_47] : memref<8x1xf32, #tpu.memory_space<vmem>>, vector<8x1xf32>
    %48 = vector.broadcast %47 : vector<8x1xf32> to vector<8x128xf32>
    %49 = arith.addf %46, %48 : vector<8x128xf32>
    %50 = arith.addf %44, %49 : vector<8x128xf32>
    %cst_48 = arith.constant 0.000000e+00 : f32
    %51 = vector.broadcast %cst_48 : f32 to vector<8x128xf32>
    %52 = arith.maximumf %50, %51 : vector<8x128xf32>
    %c0_49 = arith.constant 0 : index
    %c0_50 = arith.constant 0 : index
    %c0_51 = arith.constant 0 : index
    %53 = vector.load %arg9[%c0_49, %c0_50, %c0_51] : memref<1x8x128xf32, #tpu.memory_space<vmem>>, vector<1x8x128xf32>
    %54 = vector.shape_cast %53 : vector<1x8x128xf32> to vector<8x128xf32>
    %55 = vector.shape_cast %52 : vector<8x128xf32> to vector<1x8x128xf32>
    tpu.vector_store %arg9[%c0_49, %c0_50, %c0_51], %55 {strides = array<i32>} : memref<1x8x128xf32, #tpu.memory_space<vmem>>, vector<1x8x128xf32>,
    %c0_52 = arith.constant 0 : index
    %c252 = arith.constant 252 : index
    %56 = vector.load %arg10[%c0_52, %c252] : memref<4x256xf32, #tpu.memory_space<vmem>>, vector<4x4xf32>
    %c0_53 = arith.constant 0 : index
    %c124_54 = arith.constant 124 : index
    %57 = vector.load %arg10[%c0_53, %c124_54] : memref<4x256xf32, #tpu.memory_space<vmem>>, vector<4x4xf32>
    tpu.vector_store %arg10[%c0_53, %c124_54], %56 {strides = array<i32>} : memref<4x256xf32, #tpu.memory_space<vmem>>, vector<4x4xf32>,
    %c0_55 = arith.constant 0 : index
    %c252_56 = arith.constant 252 : index
    %58 = vector.load %arg11[%c0_55, %c252_56] : memref<8x256xf32, #tpu.memory_space<vmem>>, vector<8x4xf32>
    %c0_57 = arith.constant 0 : index
    %c124_58 = arith.constant 124 : index
    %59 = vector.load %arg11[%c0_57, %c124_58] : memref<8x256xf32, #tpu.memory_space<vmem>>, vector<8x4xf32>
    tpu.vector_store %arg11[%c0_57, %c124_58], %58 {strides = array<i32>} : memref<8x256xf32, #tpu.memory_space<vmem>>, vector<8x4xf32>,
    return
  }
  func.func @transform_0(%arg0: i32, %arg1: i32) -> (i32, i32, i32) {
    %c0_i32 = arith.constant 0 : i32
    %c0_i32_0 = arith.constant 0 : i32
    return %arg0, %c0_i32, %arg1 : i32, i32, i32
  }
  func.func @transform_1(%arg0: i32, %arg1: i32) -> (i32, i32, i32) {
    %c0_i32 = arith.constant 0 : i32
    %c0_i32_0 = arith.constant 0 : i32
    %c0_i32_1 = arith.constant 0 : i32
    %c0_i32_2 = arith.constant 0 : i32
    return %c0_i32, %c0_i32_0, %c0_i32_1 : i32, i32, i32
  }
  func.func @transform_2(%arg0: i32, %arg1: i32) -> (i32, i32) {
    %c0_i32 = arith.constant 0 : i32
    %c0_i32_0 = arith.constant 0 : i32
    %c0_i32_1 = arith.constant 0 : i32
    return %c0_i32, %c0_i32_0 : i32, i32
  }
  func.func @transform_3(%arg0: i32, %arg1: i32) -> (i32, i32, i32) {
    %c0_i32 = arith.constant 0 : i32
    %c0_i32_0 = arith.constant 0 : i32
    %c0_i32_1 = arith.constant 0 : i32
    %c0_i32_2 = arith.constant 0 : i32
    return %c0_i32, %c0_i32_0, %c0_i32_1 : i32, i32, i32
  }
  func.func @transform_4(%arg0: i32, %arg1: i32) -> (i32, i32) {
    %c0_i32 = arith.constant 0 : i32
    %c0_i32_0 = arith.constant 0 : i32
    %c0_i32_1 = arith.constant 0 : i32
    return %c0_i32, %c0_i32_0 : i32, i32
  }
  func.func @transform_5(%arg0: i32, %arg1: i32) -> (i32, i32) {
    %c0_i32 = arith.constant 0 : i32
    %c0_i32_0 = arith.constant 0 : i32
    %c0_i32_1 = arith.constant 0 : i32
    return %c0_i32, %c0_i32_0 : i32, i32
  }
  func.func @transform_6(%arg0: i32, %arg1: i32) -> (i32, i32) {
    %c0_i32 = arith.constant 0 : i32
    %c0_i32_0 = arith.constant 0 : i32
    %c0_i32_1 = arith.constant 0 : i32
    return %c0_i32, %c0_i32_0 : i32, i32
  }
  func.func @transform_7(%arg0: i32, %arg1: i32) -> (i32, i32, i32) {
    %c0_i32 = arith.constant 0 : i32
    %c0_i32_0 = arith.constant 0 : i32
    return %arg0, %c0_i32, %arg1 : i32, i32, i32
  }
}

</mosaic_0001>

<llo_original>
// kernel: tpu_custom_call.1
$region0: #{tpu_custom_call.1}
  #allocation0 [shape = 'u32[]', space=smem, size = 0x4, offset = 0x4, fixed_abs, tag = 'smem constant byte address 0x4 - core index']
  #allocation1 [shape = 'u32[144,128]{1,0:T(1,128)}', space=vmem, size = 0x12000, scoped, tag = 'internal scratch']
  #allocation2 [shape = 'f32[4,256]{1,0:T(4,128)}', space=vmem, size = 0x1000, scoped, tag = 'scratch operand']
  #allocation3 [shape = 'f32[8,256]{1,0:T(8,128)}', space=vmem, size = 0x2000, scoped, tag = 'scratch operand']
  %s0 = inlined_call_operand.vmem [shape: f32[2,4,512], index: 0, kind: input, shape index: {}]
  %s1 = inlined_call_operand.vmem [shape: f32[3,8,4], index: 1, kind: input, shape index: {}]
  %s2 = inlined_call_operand.vmem [shape: f32[8,1], index: 2, kind: input, shape index: {}]
  %s3 = inlined_call_operand.vmem [shape: f32[3,8,8], index: 3, kind: input, shape index: {}]
  %s4 = inlined_call_operand.vmem [shape: f32[8,1], index: 4, kind: input, shape index: {}]
  %s5 = inlined_call_operand.vmem [shape: f32[8,4], index: 5, kind: input, shape index: {}]
  %s6 = inlined_call_operand.vmem [shape: f32[8,1], index: 6, kind: input, shape index: {}]
  %s7 = inlined_call_operand.hbm [shape: f32[2,8,512], index: 7, kind: output, shape index: {}]
  %s8 = sld [smem:[#allocation0]]
  $region65: #{tpu_custom_call.1} parent=0
    _
  %s10 = ssub.s32 1, %s8
  %s11 = scalar_select 0, %s10, %s8
  $region1: #{tpu_custom_call.1} parent=0
    #allocation4 [shape = 'u8[8192]{0}', space=vmem, size = 0x2000, scoped, tag = 'output window, operand 0']
    #allocation5 [shape = 's32[2]{0}', space=sflag, size = 0x8, scoped, tag = 'scoped memory for tpu_custom_call.1']
    %12 = vsyncpa [#allocation5], 0
    %s13 = scalar_lea.sflag [#allocation5], 1
    %14 = vsyncpa %s13, 0
    loop: start=0, step=1, limit=10
    $region2: #{tpu_custom_call.1} parent=1 // loop_pre_header
      _
    $region3: #{tpu_custom_call.1} parent=1 // loop_header
      %s16 = sphi 0, %s20
      %p17 = scmp.ge.s32.totalorder %s16, 10
      %s23 = sphi 0, %s35
      %s24 = sphi 0, %s31
      %s25 = sphi 0, %s23
      %s26 = sphi 0, %s24
      %s27 = sphi 0, %s25
      %s28 = sphi 0, %s26
      %s40 = sphi 0, %s42
      %s43 = sphi 0, %s40
      %s44 = sphi 0, %s43
      %s60 = sphi 0, %s44
      %s64 = sphi 0, %s64
      %s66 = sphi 0, %s64
      %s67 = sphi 0, %s66
      %s81 = sphi 0, %s67
      %s85 = sphi 0, %s85
      %s87 = sphi 0, %s85
      %s88 = sphi 0, %s87
      %s102 = sphi 0, %s88
      %s106 = sphi 0, %s106
      %s108 = sphi 0, %s106
      %s109 = sphi 0, %s108
      %s123 = sphi 0, %s109
      %s127 = sphi 0, %s127
      %s129 = sphi 0, %s127
      %s130 = sphi 0, %s129
      %s144 = sphi 0, %s130
      %s148 = sphi 0, %s148
      %s150 = sphi 0, %s148
      %s151 = sphi 0, %s150
      %s165 = sphi 0, %s151
      %s169 = sphi 0, %s169
      %s171 = sphi 0, %s169
      %s172 = sphi 0, %s171
      %s186 = sphi 0, %s172
      %s194 = sphi 0, %s196
      %s197 = sphi 0, %s194
      %s198 = sphi 0, %s197
      %s214 = sphi 0, %s198
    $region4: #{tpu_custom_call.1} parent=1 // loop_header_branch
      %19 = sbr.rel (%p17) target = $region8
    $region5: #{tpu_custom_call.1} parent=1 // loop_body
      %s21 = ssub.s32 %s16, 1
      %s22 = ssub.s32 %s16, 2
      %s29 = sadd.s32 1, %s24
      %p30 = scmp.ge.s32.totalorder %s29, 4
      %s31 = scalar_select %p30, 0, %s29
      %s32 = sadd.s32 1, %s23
      %s33 = scalar_select %p30, %s32, %s23
      %p34 = scmp.ge.s32.totalorder %s33, 2
      %s35 = scalar_select %p34, 0, %s33
      %s36 = ssub.s32 %s23, %s35
      %s37 = ssub.s32 %s24, %s31
      %s38 = sor.u32 %s36, %s37
      %p39 = scmp.eq.s32.totalorder %s38, 0
      %s41 = sadd.s32 %s40, 1
      %s42 = scalar_select %p39, %s40, %s41
      %p45 = pneg %p39
      %p46 = scmp.eq.s32.totalorder %s16, 7
      %p47 = por %p45, %p46
      %p48 = scmp.ne.s32.totalorder %s40, %s43
      %p49 = scmp.eq.s32.totalorder %s16, 0
      %p50 = por %p48, %p49
      %p51 = scmp.ne.s32.totalorder %s40, %s43
      %p52 = scmp.eq.s32.totalorder %s21, 7
      %p53 = por %p51, %p52
      %p54 = scmp.ne.s32.totalorder %s43, %s44
      %p55 = scmp.eq.s32.totalorder %s21, 0
      %p56 = por %p54, %p55
      %p57 = scmp.ne.s32.totalorder %s43, %s44
      %p58 = scmp.eq.s32.totalorder %s22, 7
      %p59 = por %p57, %p58
      %p61 = scmp.ne.s32.totalorder %s44, %s60
      %p62 = scmp.eq.s32.totalorder %s22, 0
      %p63 = por %p61, %p62
      %s65 = sadd.s32 %s64, 1
      %p68 = scmp.eq.s32.totalorder %s16, 7
      %p69 = scmp.ne.s32.totalorder %s64, %s66
      %p70 = scmp.eq.s32.totalorder %s16, 0
      %p71 = por %p69, %p70
      %p72 = scmp.ne.s32.totalorder %s64, %s66
      %p73 = scmp.eq.s32.totalorder %s21, 7
      %p74 = por %p72, %p73
      %p75 = scmp.ne.s32.totalorder %s66, %s67
      %p76 = scmp.eq.s32.totalorder %s21, 0
      %p77 = por %p75, %p76
      %p78 = scmp.ne.s32.totalorder %s66, %s67
      %p79 = scmp.eq.s32.totalorder %s22, 7
      %p80 = por %p78, %p79
      %p82 = scmp.ne.s32.totalorder %s67, %s81
      %p83 = scmp.eq.s32.totalorder %s22, 0
      %p84 = por %p82, %p83
      %s86 = sadd.s32 %s85, 1
      %p89 = scmp.eq.s32.totalorder %s16, 7
      %p90 = scmp.ne.s32.totalorder %s85, %s87
      %p91 = scmp.eq.s32.totalorder %s16, 0
      %p92 = por %p90, %p91
      %p93 = scmp.ne.s32.totalorder %s85, %s87
      %p94 = scmp.eq.s32.totalorder %s21, 7
      %p95 = por %p93, %p94
      %p96 = scmp.ne.s32.totalorder %s87, %s88
      %p97 = scmp.eq.s32.totalorder %s21, 0
      %p98 = por %p96, %p97
      %p99 = scmp.ne.s32.totalorder %s87, %s88
      %p100 = scmp.eq.s32.totalorder %s22, 7
      %p101 = por %p99, %p100
      %p103 = scmp.ne.s32.totalorder %s88, %s102
      %p104 = scmp.eq.s32.totalorder %s22, 0
      %p105 = por %p103, %p104
      %s107 = sadd.s32 %s106, 1
      %p110 = scmp.eq.s32.totalorder %s16, 7
      %p111 = scmp.ne.s32.totalorder %s106, %s108
      %p112 = scmp.eq.s32.totalorder %s16, 0
      %p113 = por %p111, %p112
      %p114 = scmp.ne.s32.totalorder %s106, %s108
      %p115 = scmp.eq.s32.totalorder %s21, 7
      %p116 = por %p114, %p115
      %p117 = scmp.ne.s32.totalorder %s108, %s109
      %p118 = scmp.eq.s32.totalorder %s21, 0
      %p119 = por %p117, %p118
      %p120 = scmp.ne.s32.totalorder %s108, %s109
      %p121 = scmp.eq.s32.totalorder %s22, 7
      %p122 = por %p120, %p121
      %p124 = scmp.ne.s32.totalorder %s109, %s123
      %p125 = scmp.eq.s32.totalorder %s22, 0
      %p126 = por %p124, %p125
      %s128 = sadd.s32 %s127, 1
      %p131 = scmp.eq.s32.totalorder %s16, 7
      %p132 = scmp.ne.s32.totalorder %s127, %s129
      %p133 = scmp.eq.s32.totalorder %s16, 0
      %p134 = por %p132, %p133
      %p135 = scmp.ne.s32.totalorder %s127, %s129
      %p136 = scmp.eq.s32.totalorder %s21, 7
      %p137 = por %p135, %p136
      %p138 = scmp.ne.s32.totalorder %s129, %s130
      %p139 = scmp.eq.s32.totalorder %s21, 0
      %p140 = por %p138, %p139
      %p141 = scmp.ne.s32.totalorder %s129, %s130
      %p142 = scmp.eq.s32.totalorder %s22, 7
      %p143 = por %p141, %p142
      %p145 = scmp.ne.s32.totalorder %s130, %s144
      %p146 = scmp.eq.s32.totalorder %s22, 0
      %p147 = por %p145, %p146
      %s149 = sadd.s32 %s148, 1
      %p152 = scmp.eq.s32.totalorder %s16, 7
      %p153 = scmp.ne.s32.totalorder %s148, %s150
      %p154 = scmp.eq.s32.totalorder %s16, 0
      %p155 = por %p153, %p154
      %p156 = scmp.ne.s32.totalorder %s148, %s150
      %p157 = scmp.eq.s32.totalorder %s21, 7
      %p158 = por %p156, %p157
      %p159 = scmp.ne.s32.totalorder %s150, %s151
      %p160 = scmp.eq.s32.totalorder %s21, 0
      %p161 = por %p159, %p160
      %p162 = scmp.ne.s32.totalorder %s150, %s151
      %p163 = scmp.eq.s32.totalorder %s22, 7
      %p164 = por %p162, %p163
      %p166 = scmp.ne.s32.totalorder %s151, %s165
      %p167 = scmp.eq.s32.totalorder %s22, 0
      %p168 = por %p166, %p167
      %s170 = sadd.s32 %s169, 1
      %p173 = scmp.eq.s32.totalorder %s16, 7
      %p174 = scmp.ne.s32.totalorder %s169, %s171
      %p175 = scmp.eq.s32.totalorder %s16, 0
      %p176 = por %p174, %p175
      %p177 = scmp.ne.s32.totalorder %s169, %s171
      %p178 = scmp.eq.s32.totalorder %s21, 7
      %p179 = por %p177, %p178
      %p180 = scmp.ne.s32.totalorder %s171, %s172
      %p181 = scmp.eq.s32.totalorder %s21, 0
      %p182 = por %p180, %p181
      %p183 = scmp.ne.s32.totalorder %s171, %s172
      %p184 = scmp.eq.s32.totalorder %s22, 7
      %p185 = por %p183, %p184
      %p187 = scmp.ne.s32.totalorder %s172, %s186
      %p188 = scmp.eq.s32.totalorder %s22, 0
      %p189 = por %p187, %p188
      %s190 = ssub.s32 %s23, %s35
      %s191 = ssub.s32 %s24, %s31
      %s192 = sor.u32 %s190, %s191
      %p193 = scmp.eq.s32.totalorder %s192, 0
      %s195 = sadd.s32 %s194, 1
      %s196 = scalar_select %p193, %s194, %s195
      %p199 = pneg %p193
      %p200 = scmp.eq.s32.totalorder %s16, 7
      %p201 = por %p199, %p200
      %p202 = scmp.ne.s32.totalorder %s194, %s197
      %p203 = scmp.eq.s32.totalorder %s16, 0
      %p204 = por %p202, %p203
      %p205 = scmp.ne.s32.totalorder %s194, %s197
      %p206 = scmp.eq.s32.totalorder %s21, 7
      %p207 = por %p205, %p206
      %p208 = scmp.ne.s32.totalorder %s197, %s198
      %p209 = scmp.eq.s32.totalorder %s21, 0
      %p210 = por %p208, %p209
      %p211 = scmp.ne.s32.totalorder %s197, %s198
      %p212 = scmp.eq.s32.totalorder %s22, 7
      %p213 = por %p211, %p212
      %p215 = scmp.ne.s32.totalorder %s198, %s214
      %p216 = scmp.eq.s32.totalorder %s22, 0
      %p217 = por %p215, %p216
      %p218 = scmp.le.s32.totalorder 1, %s16
      %p219 = scmp.lt.s32.totalorder %s16, 9
      %p220 = pnand %p218, %p219
      %p221 = pneg %p220
      // Predicated region
      $region9: #{tpu_custom_call.1} parent=5 // pred_check
        _
      $region10: #{tpu_custom_call.1} parent=5 // pred_check_branch
        %223 = sbr.rel (%p220) target = $region12
      $region11: #{tpu_custom_call.1} parent=5 // pred_region
        %s224 = ssub.s32 %s16, 1
        // Predicated region
        $region13: #{tpu_custom_call.1} parent=11 // pred_check
          %p225 = pneg %p77
        $region14: #{tpu_custom_call.1} parent=11 // pred_check_branch
          %227 = sbr.rel (%p225) target = $region16
        $region15: #{tpu_custom_call.1} parent=11 // pred_region
          _
        $region16: #{tpu_custom_call.1} parent=11 // pred_fallthru
          _
        // Predicated region
        $region17: #{tpu_custom_call.1} parent=11 // pred_check
          %p228 = pneg %p98
        $region18: #{tpu_custom_call.1} parent=11 // pred_check_branch
          %230 = sbr.rel (%p228) target = $region20
        $region19: #{tpu_custom_call.1} parent=11 // pred_region
          _
        $region20: #{tpu_custom_call.1} parent=11 // pred_fallthru
          _
        // Predicated region
        $region21: #{tpu_custom_call.1} parent=11 // pred_check
          %p231 = pneg %p119
        $region22: #{tpu_custom_call.1} parent=11 // pred_check_branch
          %233 = sbr.rel (%p231) target = $region24
        $region23: #{tpu_custom_call.1} parent=11 // pred_region
          _
        $region24: #{tpu_custom_call.1} parent=11 // pred_fallthru
          _
        // Predicated region
        $region25: #{tpu_custom_call.1} parent=11 // pred_check
          %p234 = pneg %p140
        $region26: #{tpu_custom_call.1} parent=11 // pred_check_branch
          %236 = sbr.rel (%p234) target = $region28
        $region27: #{tpu_custom_call.1} parent=11 // pred_region
          _
        $region28: #{tpu_custom_call.1} parent=11 // pred_fallthru
          _
        // Predicated region
        $region29: #{tpu_custom_call.1} parent=11 // pred_check
          %p237 = pneg %p161
        $region30: #{tpu_custom_call.1} parent=11 // pred_check_branch
          %239 = sbr.rel (%p237) target = $region32
        $region31: #{tpu_custom_call.1} parent=11 // pred_region
          _
        $region32: #{tpu_custom_call.1} parent=11 // pred_fallthru
          _
        // Predicated region
        $region33: #{tpu_custom_call.1} parent=11 // pred_check
          %p240 = pneg %p182
        $region34: #{tpu_custom_call.1} parent=11 // pred_check_branch
          %242 = sbr.rel (%p240) target = $region36
        $region35: #{tpu_custom_call.1} parent=11 // pred_region
          _
        $region36: #{tpu_custom_call.1} parent=11 // pred_fallthru
          _
      $region12: #{tpu_custom_call.1} parent=5 // pred_fallthru
        _
      %p243 = scmp.lt.s32.totalorder %s16, 8
      // Predicated region
      $region37: #{tpu_custom_call.1} parent=5 // pred_check
        %p244 = pneg %p243
      $region38: #{tpu_custom_call.1} parent=5 // pred_check_branch
        %246 = sbr.rel (%p244) target = $region40
      $region39: #{tpu_custom_call.1} parent=5 // pred_region
        // Predicated region
        $region41: #{tpu_custom_call.1} parent=39 // pred_check
          %p247 = pneg %p50
        $region42: #{tpu_custom_call.1} parent=39 // pred_check_branch
          %249 = sbr.rel (%p247) target = $region44
        $region43: #{tpu_custom_call.1} parent=39 // pred_region
          %p250 = scmp.lt.s32.totalorder %s23, 1
          %s251 = scalar_select %p250, %s23, 1
          %p252 = scmp.lt.s32.totalorder %s24, 3
          %s253 = scalar_select %p252, %s24, 3
          %s254 = smul.addr %s251, 4
          %s255 = sadd.s32 %s253, %s254
          %s256 = smul.addr %s255, 4
          %s257 = scalar_lea.vmem %s0, %s256
        $region44: #{tpu_custom_call.1} parent=39 // pred_fallthru
          _
      $region40: #{tpu_custom_call.1} parent=5 // pred_fallthru
        _
      %p258 = scmp.le.s32.totalorder 1, %s16
      %p259 = scmp.lt.s32.totalorder %s16, 9
      %p260 = pnand %p258, %p259
      %p261 = pneg %p260
      // Predicated region
      $region45: #{tpu_custom_call.1} parent=5 // pred_check
        _
      $region46: #{tpu_custom_call.1} parent=5 // pred_check_branch
        %263 = sbr.rel (%p260) target = $region48
      $region47: #{tpu_custom_call.1} parent=5 // pred_region
        %s264 = ssub.s32 %s16, 1
        %p265 = scmp.lt.s32.totalorder %s25, 1
        %s266 = scalar_select %p265, %s25, 1
        %p267 = scmp.lt.s32.totalorder %s26, 3
        %s268 = scalar_select %p267, %s26, 3
        %s269 = smul.addr %s266, 4
        %s270 = sadd.s32 %s268, %s269
        %s271 = smul.addr %s270, 4
        %s272 = scalar_lea.vmem %s0, %s271
        %p273 = pneg %p56
        %p274 = pneg %p53
        %p275 = pneg %p77
        %p276 = pneg %p74
        %p277 = pneg %p98
        %p278 = pneg %p95
        %p279 = pneg %p119
        %p280 = pneg %p116
        %p281 = pneg %p140
        %p282 = pneg %p137
        %p283 = pneg %p161
        %p284 = pneg %p158
        %p285 = pneg %p182
        %p286 = pneg %p179
        %p287 = pneg %p210
        %p288 = pneg %p207
        %s289 = sand.u32 %s197, 1
        %s290 = scalar_lea.sflag [#allocation5], %s289
        %s291 = sand.u32 %s197, 1
        %s292 = smul.addr %s291, 8
        %s293 = scalar_lea.vmem [#allocation4], %s292
        %p294 = scmp.lt.s32.totalorder %s25, 1
        %s295 = scalar_select %p294, %s25, 1
        %p296 = scmp.lt.s32.totalorder %s26, 3
        %s297 = scalar_select %p296, %s26, 3
        %s298 = smul.addr %s295, 4
        %s299 = sadd.s32 %s297, %s298
        %s300 = smul.addr %s299, 4
        %s301 = scalar_lea.vmem %s0, %s300
        %p302 = scmp.eq.s32.totalorder %s26, 0
        // Predicated region
        $region49: #{tpu_custom_call.1} parent=47 // pred_check
          %p303 = pneg %p302
        $region50: #{tpu_custom_call.1} parent=47 // pred_check_branch
          %305 = sbr.rel (%p303) target = $region52
        $region51: #{tpu_custom_call.1} parent=47 // pred_region
          %vm306 = vcmask 1044448
          %307 = vst.msk [vmem:[#allocation2] sm:$0xf] %vm306, 0.0
          %vm308 = vcmask 1048544
          %309 = vst.msk [vmem:[#allocation3] sm:$0xff] %vm308, 0.0
        $region52: #{tpu_custom_call.1} parent=47 // pred_fallthru
          _
        %v310 = vld [vmem:[%s301] sm:$0xf]
        %311 = vst [vmem:[#allocation2 + $0x4] sm:$0xf] %v310
        %v312 = vld [vmem:[%s1] sm:$0xff]
        %v313 = vld [vmem:[#allocation2] sm:$0xff]
        %s314 = scalar_lea.vmem %s1, 8
        %v315 = vld [vmem:[%s314] sm:$0xff]
        %v317 = vcombine.high %v313, %v313
        %318 = vrot.lane.b32.xlu0 %v313, 2
        %v319 = vpop.permute.xlu0 %318
        %320 = vrot.lane.b32.xlu0 %v317, 2
        %v321 = vpop.permute.xlu0 %320
        %vm322 = vcmask 15360
        %v323 = vsel %vm322, %v319, %v321
        %vm324 = vcmask 31744
        %v326 = vsel %vm324, %v315, 0
        %vm328 = vcmask 1043456
        %v329 = vsel %vm328, %v323, 0
        %331 = vmatprep.subr.mxu0 0.0
        %332 = vmatpush1.msra.mxu0 %v329
        %333 = vmatprep.subr.mxu0 0.0
        %334 = vmatpush1.msra.mxu0 0.0
        %335 = vmatprep.subr.mxu0 0.0
        %336 = vmatpush1.msra.mxu0 0.0
        %337 = vmatprep.subr.mxu0 0.0
        %338 = vmatpush1.msra.mxu0 0.0
        %339 = vmatprep.subr.mxu0 0.0
        %340 = vmatpush1.msra.mxu0 0.0
        %341 = vmatprep.subr.mxu0 0.0
        %342 = vmatpush1.msra.mxu0 0.0
        %343 = vmatprep.subr.mxu0 0.0
        %344 = vmatpush1.msra.mxu0 0.0
        %345 = vmatprep.subr.mxu0 0.0
        %346 = vmatpush1.msra.mxu0 0.0
        %347 = vmatprep.subr.mxu0 0.0
        %348 = vmatpush1.msra.mxu0 0.0
        %349 = vmatprep.subr.mxu0 0.0
        %350 = vmatpush1.msra.mxu0 0.0
        %351 = vmatprep.subr.mxu0 0.0
        %352 = vmatpush1.msra.mxu0 0.0
        %353 = vmatprep.subr.mxu0 0.0
        %354 = vmatpush1.msra.mxu0 0.0
        %355 = vmatprep.subr.mxu0 0.0
        %356 = vmatpush1.msra.mxu0 0.0
        %357 = vmatprep.subr.mxu0 0.0
        %358 = vmatpush1.msra.mxu0 0.0
        %359 = vmatprep.subr.mxu0 0.0
        %360 = vmatpush1.msra.mxu0 0.0
        %361 = vmatprep.subr.mxu0 0.0
        %362 = vmatpush1.msra.mxu0 0.0
        %363 = vmatprep.subr.mxu0 0.0
        %364 = vmatpush1.msra.mxu0 0.0
        %365 = vmatprep.subr.mxu0 0.0
        %366 = vmatpush1.msra.mxu0 0.0
        %367 = vmatprep.subr.mxu0 0.0
        %368 = vmatpush1.msra.mxu0 0.0
        %369 = vmatprep.subr.mxu0 0.0
        %370 = vmatpush1.msra.mxu0 0.0
        %371 = vmatprep.subr.mxu0 0.0
        %372 = vmatpush1.msra.mxu0 0.0
        %373 = vmatprep.subr.mxu0 0.0
        %374 = vmatpush1.msra.mxu0 0.0
        %375 = vmatprep.subr.mxu0 0.0
        %376 = vmatpush1.msra.mxu0 0.0
        %377 = vmatprep.subr.mxu0 0.0
        %378 = vmatpush1.msra.mxu0 0.0
        %379 = vmatprep.subr.mxu0 0.0
        %380 = vmatpush1.msra.mxu0 0.0
        %381 = vmatprep.subr.mxu0 0.0
        %382 = vmatpush1.msra.mxu0 0.0
        %383 = vmatprep.subr.mxu0 0.0
        %384 = vmatpush1.msra.mxu0 0.0
        %385 = vmatprep.subr.mxu0 0.0
        %386 = vmatpush1.msra.mxu0 0.0
        %387 = vmatprep.subr.mxu0 0.0
        %388 = vmatpush1.msra.mxu0 0.0
        %389 = vmatprep.subr.mxu0 0.0
        %390 = vmatpush1.msra.mxu0 0.0
        %391 = vmatprep.subr.mxu0 0.0
        %392 = vmatpush1.msra.mxu0 0.0
        %393 = vmatprep.subr.mxu0 0.0
        %394 = vmatpush1.msra.mxu0 0.0
        %395 = vmatprep.mubr.f32.mxu0 0.0
        %396 = vmatmul.mubr.f32.gmra.mrb[0].mxu0 %v326
        %v397 = vpop.f32.mrb[0].mxu0
        %v398 = vadd.f32 0.0, %v397
        %v399 = vpop.f32.mrb[0].mxu0
        %400 = vdwg.mxu0
        %401 = vrot.lane.b32.xlu0 %v313, 4
        %v402 = vpop.permute.xlu0 %401
        %403 = vrot.lane.b32.xlu0 %v317, 4
        %v404 = vpop.permute.xlu0 %403
        %v405 = vsel %vm324, %v402, %v404
        %v407 = vsel %vm324, %v312, 0
        %v409 = vsel %vm328, %v405, 0
        %411 = vmatprep.subr.mxu0 0.0
        %412 = vmatpush1.msra.mxu0 %v409
        %413 = vmatprep.subr.mxu0 0.0
        %414 = vmatpush1.msra.mxu0 0.0
        %415 = vmatprep.subr.mxu0 0.0
        %416 = vmatpush1.msra.mxu0 0.0
        %417 = vmatprep.subr.mxu0 0.0
        %418 = vmatpush1.msra.mxu0 0.0
        %419 = vmatprep.subr.mxu0 0.0
        %420 = vmatpush1.msra.mxu0 0.0
        %421 = vmatprep.subr.mxu0 0.0
        %422 = vmatpush1.msra.mxu0 0.0
        %423 = vmatprep.subr.mxu0 0.0
        %424 = vmatpush1.msra.mxu0 0.0
        %425 = vmatprep.subr.mxu0 0.0
        %426 = vmatpush1.msra.mxu0 0.0
        %427 = vmatprep.subr.mxu0 0.0
        %428 = vmatpush1.msra.mxu0 0.0
        %429 = vmatprep.subr.mxu0 0.0
        %430 = vmatpush1.msra.mxu0 0.0
        %431 = vmatprep.subr.mxu0 0.0
        %432 = vmatpush1.msra.mxu0 0.0
        %433 = vmatprep.subr.mxu0 0.0
        %434 = vmatpush1.msra.mxu0 0.0
        %435 = vmatprep.subr.mxu0 0.0
        %436 = vmatpush1.msra.mxu0 0.0
        %437 = vmatprep.subr.mxu0 0.0
        %438 = vmatpush1.msra.mxu0 0.0
        %439 = vmatprep.subr.mxu0 0.0
        %440 = vmatpush1.msra.mxu0 0.0
        %441 = vmatprep.subr.mxu0 0.0
        %442 = vmatpush1.msra.mxu0 0.0
        %443 = vmatprep.subr.mxu0 0.0
        %444 = vmatpush1.msra.mxu0 0.0
        %445 = vmatprep.subr.mxu0 0.0
        %446 = vmatpush1.msra.mxu0 0.0
        %447 = vmatprep.subr.mxu0 0.0
        %448 = vmatpush1.msra.mxu0 0.0
        %449 = vmatprep.subr.mxu0 0.0
        %450 = vmatpush1.msra.mxu0 0.0
        %451 = vmatprep.subr.mxu0 0.0
        %452 = vmatpush1.msra.mxu0 0.0
        %453 = vmatprep.subr.mxu0 0.0
        %454 = vmatpush1.msra.mxu0 0.0
        %455 = vmatprep.subr.mxu0 0.0
        %456 = vmatpush1.msra.mxu0 0.0
        %457 = vmatprep.subr.mxu0 0.0
        %458 = vmatpush1.msra.mxu0 0.0
        %459 = vmatprep.subr.mxu0 0.0
        %460 = vmatpush1.msra.mxu0 0.0
        %461 = vmatprep.subr.mxu0 0.0
        %462 = vmatpush1.msra.mxu0 0.0
        %463 = vmatprep.subr.mxu0 0.0
        %464 = vmatpush1.msra.mxu0 0.0
        %465 = vmatprep.subr.mxu0 0.0
        %466 = vmatpush1.msra.mxu0 0.0
        %467 = vmatprep.subr.mxu0 0.0
        %468 = vmatpush1.msra.mxu0 0.0
        %469 = vmatprep.subr.mxu0 0.0
        %470 = vmatpush1.msra.mxu0 0.0
        %471 = vmatprep.subr.mxu0 0.0
        %472 = vmatpush1.msra.mxu0 0.0
        %473 = vmatprep.subr.mxu0 0.0
        %474 = vmatpush1.msra.mxu0 0.0
        %475 = vmatprep.mubr.f32.mxu0 0.0
        %476 = vmatmul.mubr.f32.gmra.mrb[0].mxu0 %v407
        %v477 = vpop.f32.mrb[0].mxu0
        %v478 = vadd.f32 %v398, %v477
        %v479 = vpop.f32.mrb[0].mxu0
        %480 = vdwg.mxu0
        %s481 = scalar_lea.vmem %s1, 16
        %v482 = vld [vmem:[%s481] sm:$0xff]
        %v483 = vld [vmem:[#allocation2 + $0x4] sm:$0xf]
        %v485 = vsel %vm324, %v482, 0
        %v488 = vsel %vm328, %v483, 0
        %490 = vmatprep.subr.mxu0 0.0
        %491 = vmatpush1.msra.mxu0 %v488
        %492 = vmatprep.subr.mxu0 0.0
        %493 = vmatpush1.msra.mxu0 0.0
        %494 = vmatprep.subr.mxu0 0.0
        %495 = vmatpush1.msra.mxu0 0.0
        %496 = vmatprep.subr.mxu0 0.0
        %497 = vmatpush1.msra.mxu0 0.0
        %498 = vmatprep.subr.mxu0 0.0
        %499 = vmatpush1.msra.mxu0 0.0
        %500 = vmatprep.subr.mxu0 0.0
        %501 = vmatpush1.msra.mxu0 0.0
        %502 = vmatprep.subr.mxu0 0.0
        %503 = vmatpush1.msra.mxu0 0.0
        %504 = vmatprep.subr.mxu0 0.0
        %505 = vmatpush1.msra.mxu0 0.0
        %506 = vmatprep.subr.mxu0 0.0
        %507 = vmatpush1.msra.mxu0 0.0
        %508 = vmatprep.subr.mxu0 0.0
        %509 = vmatpush1.msra.mxu0 0.0
        %510 = vmatprep.subr.mxu0 0.0
        %511 = vmatpush1.msra.mxu0 0.0
        %512 = vmatprep.subr.mxu0 0.0
        %513 = vmatpush1.msra.mxu0 0.0
        %514 = vmatprep.subr.mxu0 0.0
        %515 = vmatpush1.msra.mxu0 0.0
        %516 = vmatprep.subr.mxu0 0.0
        %517 = vmatpush1.msra.mxu0 0.0
        %518 = vmatprep.subr.mxu0 0.0
        %519 = vmatpush1.msra.mxu0 0.0
        %520 = vmatprep.subr.mxu0 0.0
        %521 = vmatpush1.msra.mxu0 0.0
        %522 = vmatprep.subr.mxu0 0.0
        %523 = vmatpush1.msra.mxu0 0.0
        %524 = vmatprep.subr.mxu0 0.0
        %525 = vmatpush1.msra.mxu0 0.0
        %526 = vmatprep.subr.mxu0 0.0
        %527 = vmatpush1.msra.mxu0 0.0
        %528 = vmatprep.subr.mxu0 0.0
        %529 = vmatpush1.msra.mxu0 0.0
        %530 = vmatprep.subr.mxu0 0.0
        %531 = vmatpush1.msra.mxu0 0.0
        %532 = vmatprep.subr.mxu0 0.0
        %533 = vmatpush1.msra.mxu0 0.0
        %534 = vmatprep.subr.mxu0 0.0
        %535 = vmatpush1.msra.mxu0 0.0
        %536 = vmatprep.subr.mxu0 0.0
        %537 = vmatpush1.msra.mxu0 0.0
        %538 = vmatprep.subr.mxu0 0.0
        %539 = vmatpush1.msra.mxu0 0.0
        %540 = vmatprep.subr.mxu0 0.0
        %541 = vmatpush1.msra.mxu0 0.0
        %542 = vmatprep.subr.mxu0 0.0
        %543 = vmatpush1.msra.mxu0 0.0
        %544 = vmatprep.subr.mxu0 0.0
        %545 = vmatpush1.msra.mxu0 0.0
        %546 = vmatprep.subr.mxu0 0.0
        %547 = vmatpush1.msra.mxu0 0.0
        %548 = vmatprep.subr.mxu0 0.0
        %549 = vmatpush1.msra.mxu0 0.0
        %550 = vmatprep.subr.mxu0 0.0
        %551 = vmatpush1.msra.mxu0 0.0
        %552 = vmatprep.subr.mxu0 0.0
        %553 = vmatpush1.msra.mxu0 0.0
        %554 = vmatprep.mubr.f32.mxu0 0.0
        %555 = vmatmul.mubr.f32.gmra.mrb[0].mxu0 %v485
        %v556 = vpop.f32.mrb[0].mxu0
        %v557 = vadd.f32 0.0, %v556
        %v558 = vpop.f32.mrb[0].mxu0
        %559 = vdwg.mxu0
        %v560 = vadd.f32 %v478, %v557
        %v561 = vld [vmem:[%s2] sm:$0xff]
        %563 = vset.pattern.permute.xlu0 0
        %564 = vperm.xlu0 %563, %v561
        %v565 = vpop.permute.xlu0 %564
        %v567 = vadd.f32 %v560, %v565
        %v568 = vmax.f32 %v567, 0.0
        %569 = vst [vmem:[#allocation3 + $0x8] sm:$0xff] %v568
        %v570 = vld [vmem:[%s3] sm:$0xff]
        %v571 = vld [vmem:[#allocation3] sm:$0xff]
        %v572 = vld [vmem:[#allocation3 + $0x8] sm:$0xff]
        %s573 = scalar_lea.vmem %s3, 8
        %v574 = vld [vmem:[%s573] sm:$0xff]
        %577 = vrot.lane.b32.xlu0 %v571, 2
        %v578 = vpop.permute.xlu0 %577
        %579 = vrot.lane.b32.xlu0 %v572, 2
        %v580 = vpop.permute.xlu0 %579
        %v581 = vsel %vm322, %v578, %v580
        %vm583 = vcmask 64512
        %v585 = vsel %vm583, %v574, 0
        %587 = vmatprep.subr.mxu0 0.0
        %588 = vmatpush1.msra.mxu0 %v581
        %589 = vmatprep.subr.mxu0 0.0
        %590 = vmatpush1.msra.mxu0 0.0
        %591 = vmatprep.subr.mxu0 0.0
        %592 = vmatpush1.msra.mxu0 0.0
        %593 = vmatprep.subr.mxu0 0.0
        %594 = vmatpush1.msra.mxu0 0.0
        %595 = vmatprep.subr.mxu0 0.0
        %596 = vmatpush1.msra.mxu0 0.0
        %597 = vmatprep.subr.mxu0 0.0
        %598 = vmatpush1.msra.mxu0 0.0
        %599 = vmatprep.subr.mxu0 0.0
        %600 = vmatpush1.msra.mxu0 0.0
        %601 = vmatprep.subr.mxu0 0.0
        %602 = vmatpush1.msra.mxu0 0.0
        %603 = vmatprep.subr.mxu0 0.0
        %604 = vmatpush1.msra.mxu0 0.0
        %605 = vmatprep.subr.mxu0 0.0
        %606 = vmatpush1.msra.mxu0 0.0
        %607 = vmatprep.subr.mxu0 0.0
        %608 = vmatpush1.msra.mxu0 0.0
        %609 = vmatprep.subr.mxu0 0.0
        %610 = vmatpush1.msra.mxu0 0.0
        %611 = vmatprep.subr.mxu0 0.0
        %612 = vmatpush1.msra.mxu0 0.0
        %613 = vmatprep.subr.mxu0 0.0
        %614 = vmatpush1.msra.mxu0 0.0
        %615 = vmatprep.subr.mxu0 0.0
        %616 = vmatpush1.msra.mxu0 0.0
        %617 = vmatprep.subr.mxu0 0.0
        %618 = vmatpush1.msra.mxu0 0.0
        %619 = vmatprep.subr.mxu0 0.0
        %620 = vmatpush1.msra.mxu0 0.0
        %621 = vmatprep.subr.mxu0 0.0
        %622 = vmatpush1.msra.mxu0 0.0
        %623 = vmatprep.subr.mxu0 0.0
        %624 = vmatpush1.msra.mxu0 0.0
        %625 = vmatprep.subr.mxu0 0.0
        %626 = vmatpush1.msra.mxu0 0.0
        %627 = vmatprep.subr.mxu0 0.0
        %628 = vmatpush1.msra.mxu0 0.0
        %629 = vmatprep.subr.mxu0 0.0
        %630 = vmatpush1.msra.mxu0 0.0
        %631 = vmatprep.subr.mxu0 0.0
        %632 = vmatpush1.msra.mxu0 0.0
        %633 = vmatprep.subr.mxu0 0.0
        %634 = vmatpush1.msra.mxu0 0.0
        %635 = vmatprep.subr.mxu0 0.0
        %636 = vmatpush1.msra.mxu0 0.0
        %637 = vmatprep.subr.mxu0 0.0
        %638 = vmatpush1.msra.mxu0 0.0
        %639 = vmatprep.subr.mxu0 0.0
        %640 = vmatpush1.msra.mxu0 0.0
        %641 = vmatprep.subr.mxu0 0.0
        %642 = vmatpush1.msra.mxu0 0.0
        %643 = vmatprep.subr.mxu0 0.0
        %644 = vmatpush1.msra.mxu0 0.0
        %645 = vmatprep.subr.mxu0 0.0
        %646 = vmatpush1.msra.mxu0 0.0
        %647 = vmatprep.subr.mxu0 0.0
        %648 = vmatpush1.msra.mxu0 0.0
        %649 = vmatprep.subr.mxu0 0.0
        %650 = vmatpush1.msra.mxu0 0.0
        %651 = vmatprep.mubr.f32.mxu0 0.0
        %652 = vmatmul.mubr.f32.gmra.mrb[0].mxu0 %v585
        %v653 = vpop.f32.mrb[0].mxu0
        %v654 = vadd.f32 0.0, %v653
        %v655 = vpop.f32.mrb[0].mxu0
        %656 = vdwg.mxu0
        %657 = vrot.lane.b32.xlu0 %v571, 4
        %v658 = vpop.permute.xlu0 %657
        %659 = vrot.lane.b32.xlu0 %v572, 4
        %v660 = vpop.permute.xlu0 %659
        %v661 = vsel %vm324, %v658, %v660
        %v664 = vsel %vm583, %v570, 0
        %666 = vmatprep.subr.mxu0 0.0
        %667 = vmatpush1.msra.mxu0 %v661
        %668 = vmatprep.subr.mxu0 0.0
        %669 = vmatpush1.msra.mxu0 0.0
        %670 = vmatprep.subr.mxu0 0.0
        %671 = vmatpush1.msra.mxu0 0.0
        %672 = vmatprep.subr.mxu0 0.0
        %673 = vmatpush1.msra.mxu0 0.0
        %674 = vmatprep.subr.mxu0 0.0
        %675 = vmatpush1.msra.mxu0 0.0
        %676 = vmatprep.subr.mxu0 0.0
        %677 = vmatpush1.msra.mxu0 0.0
        %678 = vmatprep.subr.mxu0 0.0
        %679 = vmatpush1.msra.mxu0 0.0
        %680 = vmatprep.subr.mxu0 0.0
        %681 = vmatpush1.msra.mxu0 0.0
        %682 = vmatprep.subr.mxu0 0.0
        %683 = vmatpush1.msra.mxu0 0.0
        %684 = vmatprep.subr.mxu0 0.0
        %685 = vmatpush1.msra.mxu0 0.0
        %686 = vmatprep.subr.mxu0 0.0
        %687 = vmatpush1.msra.mxu0 0.0
        %688 = vmatprep.subr.mxu0 0.0
        %689 = vmatpush1.msra.mxu0 0.0
        %690 = vmatprep.subr.mxu0 0.0
        %691 = vmatpush1.msra.mxu0 0.0
        %692 = vmatprep.subr.mxu0 0.0
        %693 = vmatpush1.msra.mxu0 0.0
        %694 = vmatprep.subr.mxu0 0.0
        %695 = vmatpush1.msra.mxu0 0.0
        %696 = vmatprep.subr.mxu0 0.0
        %697 = vmatpush1.msra.mxu0 0.0
        %698 = vmatprep.subr.mxu0 0.0
        %699 = vmatpush1.msra.mxu0 0.0
        %700 = vmatprep.subr.mxu0 0.0
        %701 = vmatpush1.msra.mxu0 0.0
        %702 = vmatprep.subr.mxu0 0.0
        %703 = vmatpush1.msra.mxu0 0.0
        %704 = vmatprep.subr.mxu0 0.0
        %705 = vmatpush1.msra.mxu0 0.0
        %706 = vmatprep.subr.mxu0 0.0
        %707 = vmatpush1.msra.mxu0 0.0
        %708 = vmatprep.subr.mxu0 0.0
        %709 = vmatpush1.msra.mxu0 0.0
        %710 = vmatprep.subr.mxu0 0.0
        %711 = vmatpush1.msra.mxu0 0.0
        %712 = vmatprep.subr.mxu0 0.0
        %713 = vmatpush1.msra.mxu0 0.0
        %714 = vmatprep.subr.mxu0 0.0
        %715 = vmatpush1.msra.mxu0 0.0
        %716 = vmatprep.subr.mxu0 0.0
        %717 = vmatpush1.msra.mxu0 0.0
        %718 = vmatprep.subr.mxu0 0.0
        %719 = vmatpush1.msra.mxu0 0.0
        %720 = vmatprep.subr.mxu0 0.0
        %721 = vmatpush1.msra.mxu0 0.0
        %722 = vmatprep.subr.mxu0 0.0
        %723 = vmatpush1.msra.mxu0 0.0
        %724 = vmatprep.subr.mxu0 0.0
        %725 = vmatpush1.msra.mxu0 0.0
        %726 = vmatprep.subr.mxu0 0.0
        %727 = vmatpush1.msra.mxu0 0.0
        %728 = vmatprep.subr.mxu0 0.0
        %729 = vmatpush1.msra.mxu0 0.0
        %730 = vmatprep.mubr.f32.mxu0 0.0
        %731 = vmatmul.mubr.f32.gmra.mrb[0].mxu0 %v664
        %v732 = vpop.f32.mrb[0].mxu0
        %v733 = vadd.f32 %v654, %v732
        %v734 = vpop.f32.mrb[0].mxu0
        %735 = vdwg.mxu0
        %s736 = scalar_lea.vmem %s3, 16
        %v737 = vld [vmem:[%s736] sm:$0xff]
        %v739 = vsel %vm583, %v737, 0
        %741 = vmatprep.subr.mxu0 0.0
        %742 = vmatpush1.msra.mxu0 %v572
        %743 = vmatprep.subr.mxu0 0.0
        %744 = vmatpush1.msra.mxu0 0.0
        %745 = vmatprep.subr.mxu0 0.0
        %746 = vmatpush1.msra.mxu0 0.0
        %747 = vmatprep.subr.mxu0 0.0
        %748 = vmatpush1.msra.mxu0 0.0
        %749 = vmatprep.subr.mxu0 0.0
        %750 = vmatpush1.msra.mxu0 0.0
        %751 = vmatprep.subr.mxu0 0.0
        %752 = vmatpush1.msra.mxu0 0.0
        %753 = vmatprep.subr.mxu0 0.0
        %754 = vmatpush1.msra.mxu0 0.0
        %755 = vmatprep.subr.mxu0 0.0
        %756 = vmatpush1.msra.mxu0 0.0
        %757 = vmatprep.subr.mxu0 0.0
        %758 = vmatpush1.msra.mxu0 0.0
        %759 = vmatprep.subr.mxu0 0.0
        %760 = vmatpush1.msra.mxu0 0.0
        %761 = vmatprep.subr.mxu0 0.0
        %762 = vmatpush1.msra.mxu0 0.0
        %763 = vmatprep.subr.mxu0 0.0
        %764 = vmatpush1.msra.mxu0 0.0
        %765 = vmatprep.subr.mxu0 0.0
        %766 = vmatpush1.msra.mxu0 0.0
        %767 = vmatprep.subr.mxu0 0.0
        %768 = vmatpush1.msra.mxu0 0.0
        %769 = vmatprep.subr.mxu0 0.0
        %770 = vmatpush1.msra.mxu0 0.0
        %771 = vmatprep.subr.mxu0 0.0
        %772 = vmatpush1.msra.mxu0 0.0
        %773 = vmatprep.subr.mxu0 0.0
        %774 = vmatpush1.msra.mxu0 0.0
        %775 = vmatprep.subr.mxu0 0.0
        %776 = vmatpush1.msra.mxu0 0.0
        %777 = vmatprep.subr.mxu0 0.0
        %778 = vmatpush1.msra.mxu0 0.0
        %779 = vmatprep.subr.mxu0 0.0
        %780 = vmatpush1.msra.mxu0 0.0
        %781 = vmatprep.subr.mxu0 0.0
        %782 = vmatpush1.msra.mxu0 0.0
        %783 = vmatprep.subr.mxu0 0.0
        %784 = vmatpush1.msra.mxu0 0.0
        %785 = vmatprep.subr.mxu0 0.0
        %786 = vmatpush1.msra.mxu0 0.0
        %787 = vmatprep.subr.mxu0 0.0
        %788 = vmatpush1.msra.mxu0 0.0
        %789 = vmatprep.subr.mxu0 0.0
        %790 = vmatpush1.msra.mxu0 0.0
        %791 = vmatprep.subr.mxu0 0.0
        %792 = vmatpush1.msra.mxu0 0.0
        %793 = vmatprep.subr.mxu0 0.0
        %794 = vmatpush1.msra.mxu0 0.0
        %795 = vmatprep.subr.mxu0 0.0
        %796 = vmatpush1.msra.mxu0 0.0
        %797 = vmatprep.subr.mxu0 0.0
        %798 = vmatpush1.msra.mxu0 0.0
        %799 = vmatprep.subr.mxu0 0.0
        %800 = vmatpush1.msra.mxu0 0.0
        %801 = vmatprep.subr.mxu0 0.0
        %802 = vmatpush1.msra.mxu0 0.0
        %803 = vmatprep.subr.mxu0 0.0
        %804 = vmatpush1.msra.mxu0 0.0
        %805 = vmatprep.mubr.f32.mxu0 0.0
        %806 = vmatmul.mubr.f32.gmra.mrb[0].mxu0 %v739
        %v807 = vpop.f32.mrb[0].mxu0
        %v808 = vadd.f32 0.0, %v807
        %v809 = vpop.f32.mrb[0].mxu0
        %810 = vdwg.mxu0
        %v811 = vadd.f32 %v733, %v808
        %v812 = vld [vmem:[%s4] sm:$0xff]
        %814 = vset.pattern.permute.xlu0 0
        %815 = vperm.xlu0 %814, %v812
        %v816 = vpop.permute.xlu0 %815
        %v818 = vadd.f32 %v811, %v816
        %v819 = vmax.f32 %v818, 0.0
        %v820 = vld [vmem:[%s5] sm:$0xff]
        %v821 = vld [vmem:[%s6] sm:$0xff]
        %823 = vset.pattern.permute.xlu0 0
        %824 = vperm.xlu0 %823, %v821
        %v825 = vpop.permute.xlu0 %824
        %v828 = vsel %vm324, %v820, 0
        %v831 = vsel %vm328, %v310, 0
        %833 = vmatprep.subr.mxu0 0.0
        %834 = vmatpush1.msra.mxu0 %v831
        %835 = vmatprep.subr.mxu0 0.0
        %836 = vmatpush1.msra.mxu0 0.0
        %837 = vmatprep.subr.mxu0 0.0
        %838 = vmatpush1.msra.mxu0 0.0
        %839 = vmatprep.subr.mxu0 0.0
        %840 = vmatpush1.msra.mxu0 0.0
        %841 = vmatprep.subr.mxu0 0.0
        %842 = vmatpush1.msra.mxu0 0.0
        %843 = vmatprep.subr.mxu0 0.0
        %844 = vmatpush1.msra.mxu0 0.0
        %845 = vmatprep.subr.mxu0 0.0
        %846 = vmatpush1.msra.mxu0 0.0
        %847 = vmatprep.subr.mxu0 0.0
        %848 = vmatpush1.msra.mxu0 0.0
        %849 = vmatprep.subr.mxu0 0.0
        %850 = vmatpush1.msra.mxu0 0.0
        %851 = vmatprep.subr.mxu0 0.0
        %852 = vmatpush1.msra.mxu0 0.0
        %853 = vmatprep.subr.mxu0 0.0
        %854 = vmatpush1.msra.mxu0 0.0
        %855 = vmatprep.subr.mxu0 0.0
        %856 = vmatpush1.msra.mxu0 0.0
        %857 = vmatprep.subr.mxu0 0.0
        %858 = vmatpush1.msra.mxu0 0.0
        %859 = vmatprep.subr.mxu0 0.0
        %860 = vmatpush1.msra.mxu0 0.0
        %861 = vmatprep.subr.mxu0 0.0
        %862 = vmatpush1.msra.mxu0 0.0
        %863 = vmatprep.subr.mxu0 0.0
        %864 = vmatpush1.msra.mxu0 0.0
        %865 = vmatprep.subr.mxu0 0.0
        %866 = vmatpush1.msra.mxu0 0.0
        %867 = vmatprep.subr.mxu0 0.0
        %868 = vmatpush1.msra.mxu0 0.0
        %869 = vmatprep.subr.mxu0 0.0
        %870 = vmatpush1.msra.mxu0 0.0
        %871 = vmatprep.subr.mxu0 0.0
        %872 = vmatpush1.msra.mxu0 0.0
        %873 = vmatprep.subr.mxu0 0.0
        %874 = vmatpush1.msra.mxu0 0.0
        %875 = vmatprep.subr.mxu0 0.0
        %876 = vmatpush1.msra.mxu0 0.0
        %877 = vmatprep.subr.mxu0 0.0
        %878 = vmatpush1.msra.mxu0 0.0
        %879 = vmatprep.subr.mxu0 0.0
        %880 = vmatpush1.msra.mxu0 0.0
        %881 = vmatprep.subr.mxu0 0.0
        %882 = vmatpush1.msra.mxu0 0.0
        %883 = vmatprep.subr.mxu0 0.0
        %884 = vmatpush1.msra.mxu0 0.0
        %885 = vmatprep.subr.mxu0 0.0
        %886 = vmatpush1.msra.mxu0 0.0
        %887 = vmatprep.subr.mxu0 0.0
        %888 = vmatpush1.msra.mxu0 0.0
        %889 = vmatprep.subr.mxu0 0.0
        %890 = vmatpush1.msra.mxu0 0.0
        %891 = vmatprep.subr.mxu0 0.0
        %892 = vmatpush1.msra.mxu0 0.0
        %893 = vmatprep.subr.mxu0 0.0
        %894 = vmatpush1.msra.mxu0 0.0
        %895 = vmatprep.subr.mxu0 0.0
        %896 = vmatpush1.msra.mxu0 0.0
        %897 = vmatprep.mubr.f32.mxu0 0.0
        %898 = vmatmul.mubr.f32.gmra.mrb[0].mxu0 %v828
        %v899 = vpop.f32.mrb[0].mxu0
        %v900 = vadd.f32 %v825, %v899
        %v901 = vpop.f32.mrb[0].mxu0
        %902 = vdwg.mxu0
        %v903 = vadd.f32 %v819, %v900
        %v904 = vmax.f32 %v903, 0.0
        %905 = vst [vmem:[%s293] sm:$0xff] %v904
        %v906 = vld [vmem:[#allocation2 + $0x4] sm:$0xf]
        %vm907 = vcmask 1044448
        %908 = vst.msk [vmem:[#allocation2] sm:$0xf] %vm907, %v906
        %v909 = vld [vmem:[#allocation3 + $0x8] sm:$0xff]
        %vm910 = vcmask 1048544
        %911 = vst.msk [vmem:[#allocation3] sm:$0xff] %vm910, %v909
        %s912 = sand.u32 %s197, 1
        %s913 = scalar_lea.sflag [#allocation5], %s912
        %s914 = sand.u32 %s197, 1
        %s915 = smul.addr %s914, 8
        %s916 = scalar_lea.vmem [#allocation4], %s915
        // Predicated region
        $region53: #{tpu_custom_call.1} parent=47 // pred_check
          %p917 = pneg %p207
        $region54: #{tpu_custom_call.1} parent=47 // pred_check_branch
          %919 = sbr.rel (%p917) target = $region56
        $region55: #{tpu_custom_call.1} parent=47 // pred_region
          %s921 = ssub.s32 128, 128
          %922 = vsyncadd %s913, %s921
          %s923 = smul.addr %s25, 4
          %s924 = sadd.s32 %s26, %s923
          %s925 = smul.addr %s924, 128
          %s926 = scalar_lea.hbm %s7, %s925
          %s928 = sshll.u32 %s916, 4
          %s929 = int_to_ptr.vmem [resolvable:$true] %s928
          %931 = dma.vmem_to_hbm [thread:$0]  %s929, 128, %s926, %s913
        $region56: #{tpu_custom_call.1} parent=47 // pred_fallthru
          _
      $region48: #{tpu_custom_call.1} parent=5 // pred_fallthru
        _
      %p932 = scmp.le.s32.totalorder 2, %s16
      // Predicated region
      $region57: #{tpu_custom_call.1} parent=5 // pred_check
        %p933 = pneg %p932
      $region58: #{tpu_custom_call.1} parent=5 // pred_check_branch
        %935 = sbr.rel (%p933) target = $region60
      $region59: #{tpu_custom_call.1} parent=5 // pred_region
        %s936 = ssub.s32 %s16, 2
        // Predicated region
        $region61: #{tpu_custom_call.1} parent=59 // pred_check
          %p937 = pneg %p213
        $region62: #{tpu_custom_call.1} parent=59 // pred_check_branch
          %939 = sbr.rel (%p937) target = $region64
        $region63: #{tpu_custom_call.1} parent=59 // pred_region
          %s940 = sand.u32 %s198, 1
          %s941 = scalar_lea.sflag [#allocation5], %s940
          %s942 = sand.u32 %s198, 1
          %s943 = smul.addr %s942, 8
          %s944 = scalar_lea.vmem [#allocation4], %s943
          %945 = dma.done %s941, 128
        $region64: #{tpu_custom_call.1} parent=59 // pred_fallthru
          _
      $region60: #{tpu_custom_call.1} parent=5 // pred_fallthru
        _
    $region6: #{tpu_custom_call.1} parent=1 // loop_footer
      %s20 = sadd.s32 1, %s16
    $region7: #{tpu_custom_call.1} parent=1 // loop_footer_branch
      %15 = sbr.rel target = $region3
    $region8: #{tpu_custom_call.1} parent=1 // loop_exit
      _
    %946 = vsyncpa [#allocation5], 1
    %s947 = scalar_lea.sflag [#allocation5], 1
    %948 = vsyncpa %s947, 1

</llo_original>
